<compile_context>
chip_gen: v7x
topology: tpu7x:2x2x1
jax: 0.10.0
libtpu: 0.0.40
codegen_flags: <defaults>
</compile_context>

<pallas_src>
import functools

import jax
import jax.numpy as jnp
from jax.experimental import pallas as pl
from jax.experimental.pallas import tpu as pltpu  # noqa: F401  (TPU backend)


def _encoder_kernel(x_ref, wx_ref, bx_ref, whh_ref, out_ref, *,
                    seq_len, batch, h_dim):
    B, H = batch, h_dim

    # x-path for every timestep in one batched MXU matmul:
    #   (T*B, 2) @ (2, 4H) + (1, 4H)  ->  (T*B, 4H)
    gates_x = jnp.dot(x_ref[...], wx_ref[...],
                      preferred_element_type=jnp.float32) + bx_ref[...]

    whh = whh_ref[...]                       # (H, 4H), resident in vregs/VMEM
    h = jnp.zeros((B, H), jnp.float32)
    c = jnp.zeros((B, H), jnp.float32)       # Encoder.init_hidden -> zeros

    # Fully unrolled recurrence (seq_len small & static). Only the
    # h @ W_hh^T matmul is on the serial critical path.
    for t in range(seq_len):
        gates = gates_x[t * B:(t + 1) * B, :] + jnp.dot(
            h, whh, preferred_element_type=jnp.float32)        # (B, 4H)

        # PyTorch gate layout [i | f | g | o]; i,f span a full 128-lane vreg.
        if_g = jax.nn.sigmoid(gates[:, :2 * H])
        i_g = if_g[:, :H]
        f_g = if_g[:, H:]
        g_g = jnp.tanh(gates[:, 2 * H:3 * H])
        o_g = jax.nn.sigmoid(gates[:, 3 * H:])

        c = f_g * c + i_g * g_g
        h = o_g * jnp.tanh(c)

    out_ref[0] = h.astype(out_ref.dtype)     # final hidden state (num_layers=1)


def encoder_forward(obs_traj, params, *, embedding_dim=64, h_dim=64):
    """obs_traj: (T, B, 2) float32 -> final_h: (1, B, h_dim) float32."""
    T, B, _ = obs_traj.shape
    H = h_dim
    del embedding_dim  # folded away below

    wemb_t = params["w_emb"].T                    # (2, E)
    wih_t = params["w_ih"].T                      # (E, 4H)
    whh_t = params["w_hh"].T                      # (H, 4H)

    # Fold spatial_embedding (Linear(2, E)) into the input-to-hidden weights:
    #   emb = x @ Wemb^T + bemb ;  gates_x = emb @ Wih^T + b_ih + b_hh
    #   =>  gates_x = x @ (Wemb^T Wih^T) + (bemb @ Wih^T + b_ih + b_hh)
    w_x = (wemb_t @ wih_t).astype(jnp.float32)                        # (2, 4H)
    b_x = (params["b_emb"] @ wih_t + params["b_ih"]
           + params["b_hh"]).reshape(1, 4 * H).astype(jnp.float32)    # (1, 4H)

    x2d = obs_traj.reshape(T * B, 2).astype(jnp.float32)              # (T*B, 2)

    kernel = functools.partial(_encoder_kernel, seq_len=T, batch=B, h_dim=H)

    return pl.pallas_call(
        kernel,
        out_shape=jax.ShapeDtypeStruct((1, B, H), jnp.float32),
        # grid = (): single kernel invocation, all operands fully VMEM-resident.
        in_specs=[
            pl.BlockSpec((T * B, 2), lambda: (0, 0)),
            pl.BlockSpec((2, 4 * H), lambda: (0, 0)),
            pl.BlockSpec((1, 4 * H), lambda: (0, 0)),
            pl.BlockSpec((H, 4 * H), lambda: (0, 0)),
        ],
        out_specs=pl.BlockSpec((1, B, H), lambda: (0, 0, 0)),
    )(x2d, w_x, b_x, whh_t)


def make_params(key, embedding_dim=64, h_dim=64):
    """Deterministic synthetic parameters matching nn.Linear / nn.LSTM shapes."""
    ks = jax.random.split(key, 6)
    u = lambda k, shape, bound: jax.random.uniform(
        k, shape, jnp.float32, minval=-bound, maxval=bound)
    lin_bound = 1.0 / jnp.sqrt(2.0)
    lstm_bound = 1.0 / jnp.sqrt(float(h_dim))
    return {
        "w_emb": u(ks[0], (embedding_dim, 2), lin_bound),           # Linear(2, E).weight
        "b_emb": u(ks[1], (embedding_dim,), lin_bound),             # Linear(2, E).bias
        "w_ih": u(ks[2], (4 * h_dim, embedding_dim), lstm_bound),   # LSTM.weight_ih_l0
        "w_hh": u(ks[3], (4 * h_dim, h_dim), lstm_bound),           # LSTM.weight_hh_l0
        "b_ih": u(ks[4], (4 * h_dim,), lstm_bound),                 # LSTM.bias_ih_l0
        "b_hh": u(ks[5], (4 * h_dim,), lstm_bound),                 # LSTM.bias_hh_l0
    }


def encoder_reference(obs_traj, params, *, embedding_dim=64, h_dim=64):
    """Pure-JAX reference for the same forward pass (for verification)."""
    T, B, _ = obs_traj.shape
    emb = obs_traj.reshape(-1, 2) @ params["w_emb"].T + params["b_emb"]
    emb = emb.reshape(T, B, embedding_dim)
    b = params["b_ih"] + params["b_hh"]

    def step(carry, x_t):
        h, c = carry
        gates = x_t @ params["w_ih"].T + h @ params["w_hh"].T + b
        i_g, f_g, g_g, o_g = jnp.split(gates, 4, axis=-1)
        c = jax.nn.sigmoid(f_g) * c + jax.nn.sigmoid(i_g) * jnp.tanh(g_g)
        h = jax.nn.sigmoid(o_g) * jnp.tanh(c)
        return (h, c), None

    h0 = jnp.zeros((B, h_dim), jnp.float32)
    (h_final, _), _ = jax.lax.scan(step, (h0, h0), emb)
    return h_final[None]  # (1, B, H)


if __name__ == "__main__":
    EMB, HID = 64, 64
    T, B = 8, 8  # obs_len=8, batch=8

    key = jax.random.PRNGKey(0)
    k_params, k_x = jax.random.split(key)
    params = make_params(k_params, EMB, HID)
    obs_traj = jax.random.normal(k_x, (T, B, 2), dtype=jnp.float32)

    final_h = encoder_forward(obs_traj, params, embedding_dim=EMB, h_dim=HID)
    final_h = jax.block_until_ready(final_h)

    ref = encoder_reference(obs_traj, params, embedding_dim=EMB, h_dim=HID)
    assert final_h.shape == (1, B, HID)
    assert jnp.allclose(final_h, ref, atol=5e-2, rtol=5e-2), "mismatch vs reference"

    print("KERNEL_OK")
</pallas_src>

<mosaic_0001>
module attributes {stable_mosaic.version = 11 : i64} {
  func.func @_encoder_kernel(%arg0: memref<64x2xf32, #tpu.memory_space<vmem>>, %arg1: memref<2x256xf32, #tpu.memory_space<vmem>>, %arg2: memref<1x256xf32, #tpu.memory_space<vmem>>, %arg3: memref<64x256xf32, #tpu.memory_space<vmem>>, %arg4: memref<1x8x64xf32, #tpu.memory_space<vmem>>) attributes {dimension_semantics = [], scalar_prefetch = 0 : i64, scratch_operands = 0 : i64, tpu.core_type = #tpu.core_type<tc>} {
    %c0 = arith.constant 0 : index
    %c0_0 = arith.constant 0 : index
    %0 = vector.load %arg0[%c0, %c0_0] : memref<64x2xf32, #tpu.memory_space<vmem>>, vector<64x2xf32>
    %c0_1 = arith.constant 0 : index
    %c0_2 = arith.constant 0 : index
    %1 = vector.load %arg1[%c0_1, %c0_2] : memref<2x256xf32, #tpu.memory_space<vmem>>, vector<2x256xf32>
    %cst = arith.constant dense<0.000000e+00> : vector<64x256xf32>
    %2 = tpu.matmul %0, %1, %cst {dimension_numbers = #tpu.dot_dimension_numbers<[1], [0], [0], [1], [0, 0, 1, 1], [], []>} : vector<64x2xf32>, vector<2x256xf32>, vector<64x256xf32> -> vector<64x256xf32>
    %c0_3 = arith.constant 0 : index
    %c0_4 = arith.constant 0 : index
    %3 = vector.load %arg2[%c0_3, %c0_4] : memref<1x256xf32, #tpu.memory_space<vmem>>, vector<1x256xf32>
    %4 = vector.broadcast %3 : vector<1x256xf32> to vector<64x256xf32>
    %5 = arith.addf %2, %4 : vector<64x256xf32>
    %c0_5 = arith.constant 0 : index
    %c0_6 = arith.constant 0 : index
    %6 = vector.load %arg3[%c0_5, %c0_6] : memref<64x256xf32, #tpu.memory_space<vmem>>, vector<64x256xf32>
    %cst_7 = arith.constant 0.000000e+00 : f32
    %7 = vector.broadcast %cst_7 : f32 to vector<8x64xf32>
    %cst_8 = arith.constant 0.000000e+00 : f32
    %8 = vector.broadcast %cst_8 : f32 to vector<8x64xf32>
    %9 = vector.extract_strided_slice %5 {offsets = [0, 0], sizes = [8, 256], strides = [1, 1]} : vector<64x256xf32> to vector<8x256xf32>
    %cst_9 = arith.constant dense<0.000000e+00> : vector<8x256xf32>
    %10 = tpu.matmul %7, %6, %cst_9 {dimension_numbers = #tpu.dot_dimension_numbers<[1], [0], [0], [1], [0, 0, 1, 1], [], []>} : vector<8x64xf32>, vector<64x256xf32>, vector<8x256xf32> -> vector<8x256xf32>
    %11 = arith.addf %9, %10 : vector<8x256xf32>
    %12 = vector.extract_strided_slice %11 {offsets = [0, 0], sizes = [8, 128], strides = [1, 1]} : vector<8x256xf32> to vector<8x128xf32>
    %13 = arith.negf %12 : vector<8x128xf32>
    %14 = math.exp %13 : vector<8x128xf32>
    %cst_10 = arith.constant 1.000000e+00 : f32
    %15 = vector.broadcast %cst_10 : f32 to vector<8x128xf32>
    %16 = arith.addf %15, %14 : vector<8x128xf32>
    %17 = arith.divf %15, %16 : vector<8x128xf32>
    %18 = vector.extract_strided_slice %17 {offsets = [0, 0], sizes = [8, 64], strides = [1, 1]} : vector<8x128xf32> to vector<8x64xf32>
    %19 = vector.extract_strided_slice %17 {offsets = [0, 64], sizes = [8, 64], strides = [1, 1]} : vector<8x128xf32> to vector<8x64xf32>
    %20 = vector.extract_strided_slice %11 {offsets = [0, 128], sizes = [8, 64], strides = [1, 1]} : vector<8x256xf32> to vector<8x64xf32>
    %21 = math.tanh %20 : vector<8x64xf32>
    %22 = vector.extract_strided_slice %11 {offsets = [0, 192], sizes = [8, 64], strides = [1, 1]} : vector<8x256xf32> to vector<8x64xf32>
    %23 = arith.negf %22 : vector<8x64xf32>
    %24 = math.exp %23 : vector<8x64xf32>
    %cst_11 = arith.constant 1.000000e+00 : f32
    %25 = vector.broadcast %cst_11 : f32 to vector<8x64xf32>
    %26 = arith.addf %25, %24 : vector<8x64xf32>
    %27 = arith.divf %25, %26 : vector<8x64xf32>
    %28 = arith.mulf %19, %8 : vector<8x64xf32>
    %29 = arith.mulf %18, %21 : vector<8x64xf32>
    %30 = arith.addf %28, %29 : vector<8x64xf32>
    %31 = math.tanh %30 : vector<8x64xf32>
    %32 = arith.mulf %27, %31 : vector<8x64xf32>
    %33 = vector.extract_strided_slice %5 {offsets = [8, 0], sizes = [8, 256], strides = [1, 1]} : vector<64x256xf32> to vector<8x256xf32>
    %cst_12 = arith.constant dense<0.000000e+00> : vector<8x256xf32>
    %34 = tpu.matmul %32, %6, %cst_12 {dimension_numbers = #tpu.dot_dimension_numbers<[1], [0], [0], [1], [0, 0, 1, 1], [], []>} : vector<8x64xf32>, vector<64x256xf32>, vector<8x256xf32> -> vector<8x256xf32>
    %35 = arith.addf %33, %34 : vector<8x256xf32>
    %36 = vector.extract_strided_slice %35 {offsets = [0, 0], sizes = [8, 128], strides = [1, 1]} : vector<8x256xf32> to vector<8x128xf32>
    %37 = arith.negf %36 : vector<8x128xf32>
    %38 = math.exp %37 : vector<8x128xf32>
    %cst_13 = arith.constant 1.000000e+00 : f32
    %39 = vector.broadcast %cst_13 : f32 to vector<8x128xf32>
    %40 = arith.addf %39, %38 : vector<8x128xf32>
    %41 = arith.divf %39, %40 : vector<8x128xf32>
    %42 = vector.extract_strided_slice %41 {offsets = [0, 0], sizes = [8, 64], strides = [1, 1]} : vector<8x128xf32> to vector<8x64xf32>
    %43 = vector.extract_strided_slice %41 {offsets = [0, 64], sizes = [8, 64], strides = [1, 1]} : vector<8x128xf32> to vector<8x64xf32>
    %44 = vector.extract_strided_slice %35 {offsets = [0, 128], sizes = [8, 64], strides = [1, 1]} : vector<8x256xf32> to vector<8x64xf32>
    %45 = math.tanh %44 : vector<8x64xf32>
    %46 = vector.extract_strided_slice %35 {offsets = [0, 192], sizes = [8, 64], strides = [1, 1]} : vector<8x256xf32> to vector<8x64xf32>
    %47 = arith.negf %46 : vector<8x64xf32>
    %48 = math.exp %47 : vector<8x64xf32>
    %cst_14 = arith.constant 1.000000e+00 : f32
    %49 = vector.broadcast %cst_14 : f32 to vector<8x64xf32>
    %50 = arith.addf %49, %48 : vector<8x64xf32>
    %51 = arith.divf %49, %50 : vector<8x64xf32>
    %52 = arith.mulf %43, %30 : vector<8x64xf32>
    %53 = arith.mulf %42, %45 : vector<8x64xf32>
    %54 = arith.addf %52, %53 : vector<8x64xf32>
    %55 = math.tanh %54 : vector<8x64xf32>
    %56 = arith.mulf %51, %55 : vector<8x64xf32>
    %57 = vector.extract_strided_slice %5 {offsets = [16, 0], sizes = [8, 256], strides = [1, 1]} : vector<64x256xf32> to vector<8x256xf32>
    %cst_15 = arith.constant dense<0.000000e+00> : vector<8x256xf32>
    %58 = tpu.matmul %56, %6, %cst_15 {dimension_numbers = #tpu.dot_dimension_numbers<[1], [0], [0], [1], [0, 0, 1, 1], [], []>} : vector<8x64xf32>, vector<64x256xf32>, vector<8x256xf32> -> vector<8x256xf32>
    %59 = arith.addf %57, %58 : vector<8x256xf32>
    %60 = vector.extract_strided_slice %59 {offsets = [0, 0], sizes = [8, 128], strides = [1, 1]} : vector<8x256xf32> to vector<8x128xf32>
    %61 = arith.negf %60 : vector<8x128xf32>
    %62 = math.exp %61 : vector<8x128xf32>
    %cst_16 = arith.constant 1.000000e+00 : f32
    %63 = vector.broadcast %cst_16 : f32 to vector<8x128xf32>
    %64 = arith.addf %63, %62 : vector<8x128xf32>
    %65 = arith.divf %63, %64 : vector<8x128xf32>
    %66 = vector.extract_strided_slice %65 {offsets = [0, 0], sizes = [8, 64], strides = [1, 1]} : vector<8x128xf32> to vector<8x64xf32>
    %67 = vector.extract_strided_slice %65 {offsets = [0, 64], sizes = [8, 64], strides = [1, 1]} : vector<8x128xf32> to vector<8x64xf32>
    %68 = vector.extract_strided_slice %59 {offsets = [0, 128], sizes = [8, 64], strides = [1, 1]} : vector<8x256xf32> to vector<8x64xf32>
    %69 = math.tanh %68 : vector<8x64xf32>
    %70 = vector.extract_strided_slice %59 {offsets = [0, 192], sizes = [8, 64], strides = [1, 1]} : vector<8x256xf32> to vector<8x64xf32>
    %71 = arith.negf %70 : vector<8x64xf32>
    %72 = math.exp %71 : vector<8x64xf32>
    %cst_17 = arith.constant 1.000000e+00 : f32
    %73 = vector.broadcast %cst_17 : f32 to vector<8x64xf32>
    %74 = arith.addf %73, %72 : vector<8x64xf32>
    %75 = arith.divf %73, %74 : vector<8x64xf32>
    %76 = arith.mulf %67, %54 : vector<8x64xf32>
    %77 = arith.mulf %66, %69 : vector<8x64xf32>
    %78 = arith.addf %76, %77 : vector<8x64xf32>
    %79 = math.tanh %78 : vector<8x64xf32>
    %80 = arith.mulf %75, %79 : vector<8x64xf32>
    %81 = vector.extract_strided_slice %5 {offsets = [24, 0], sizes = [8, 256], strides = [1, 1]} : vector<64x256xf32> to vector<8x256xf32>
    %cst_18 = arith.constant dense<0.000000e+00> : vector<8x256xf32>
    %82 = tpu.matmul %80, %6, %cst_18 {dimension_numbers = #tpu.dot_dimension_numbers<[1], [0], [0], [1], [0, 0, 1, 1], [], []>} : vector<8x64xf32>, vector<64x256xf32>, vector<8x256xf32> -> vector<8x256xf32>
    %83 = arith.addf %81, %82 : vector<8x256xf32>
    %84 = vector.extract_strided_slice %83 {offsets = [0, 0], sizes = [8, 128], strides = [1, 1]} : vector<8x256xf32> to vector<8x128xf32>
    %85 = arith.negf %84 : vector<8x128xf32>
    %86 = math.exp %85 : vector<8x128xf32>
    %cst_19 = arith.constant 1.000000e+00 : f32
    %87 = vector.broadcast %cst_19 : f32 to vector<8x128xf32>
    %88 = arith.addf %87, %86 : vector<8x128xf32>
    %89 = arith.divf %87, %88 : vector<8x128xf32>
    %90 = vector.extract_strided_slice %89 {offsets = [0, 0], sizes = [8, 64], strides = [1, 1]} : vector<8x128xf32> to vector<8x64xf32>
    %91 = vector.extract_strided_slice %89 {offsets = [0, 64], sizes = [8, 64], strides = [1, 1]} : vector<8x128xf32> to vector<8x64xf32>
    %92 = vector.extract_strided_slice %83 {offsets = [0, 128], sizes = [8, 64], strides = [1, 1]} : vector<8x256xf32> to vector<8x64xf32>
    %93 = math.tanh %92 : vector<8x64xf32>
    %94 = vector.extract_strided_slice %83 {offsets = [0, 192], sizes = [8, 64], strides = [1, 1]} : vector<8x256xf32> to vector<8x64xf32>
    %95 = arith.negf %94 : vector<8x64xf32>
    %96 = math.exp %95 : vector<8x64xf32>
    %cst_20 = arith.constant 1.000000e+00 : f32
    %97 = vector.broadcast %cst_20 : f32 to vector<8x64xf32>
    %98 = arith.addf %97, %96 : vector<8x64xf32>
    %99 = arith.divf %97, %98 : vector<8x64xf32>
    %100 = arith.mulf %91, %78 : vector<8x64xf32>
    %101 = arith.mulf %90, %93 : vector<8x64xf32>
    %102 = arith.addf %100, %101 : vector<8x64xf32>
    %103 = math.tanh %102 : vector<8x64xf32>
    %104 = arith.mulf %99, %103 : vector<8x64xf32>
    %105 = vector.extract_strided_slice %5 {offsets = [32, 0], sizes = [8, 256], strides = [1, 1]} : vector<64x256xf32> to vector<8x256xf32>
    %cst_21 = arith.constant dense<0.000000e+00> : vector<8x256xf32>
    %106 = tpu.matmul %104, %6, %cst_21 {dimension_numbers = #tpu.dot_dimension_numbers<[1], [0], [0], [1], [0, 0, 1, 1], [], []>} : vector<8x64xf32>, vector<64x256xf32>, vector<8x256xf32> -> vector<8x256xf32>
    %107 = arith.addf %105, %106 : vector<8x256xf32>
    %108 = vector.extract_strided_slice %107 {offsets = [0, 0], sizes = [8, 128], strides = [1, 1]} : vector<8x256xf32> to vector<8x128xf32>
    %109 = arith.negf %108 : vector<8x128xf32>
    %110 = math.exp %109 : vector<8x128xf32>
    %cst_22 = arith.constant 1.000000e+00 : f32
    %111 = vector.broadcast %cst_22 : f32 to vector<8x128xf32>
    %112 = arith.addf %111, %110 : vector<8x128xf32>
    %113 = arith.divf %111, %112 : vector<8x128xf32>
    %114 = vector.extract_strided_slice %113 {offsets = [0, 0], sizes = [8, 64], strides = [1, 1]} : vector<8x128xf32> to vector<8x64xf32>
    %115 = vector.extract_strided_slice %113 {offsets = [0, 64], sizes = [8, 64], strides = [1, 1]} : vector<8x128xf32> to vector<8x64xf32>
    %116 = vector.extract_strided_slice %107 {offsets = [0, 128], sizes = [8, 64], strides = [1, 1]} : vector<8x256xf32> to vector<8x64xf32>
    %117 = math.tanh %116 : vector<8x64xf32>
    %118 = vector.extract_strided_slice %107 {offsets = [0, 192], sizes = [8, 64], strides = [1, 1]} : vector<8x256xf32> to vector<8x64xf32>
    %119 = arith.negf %118 : vector<8x64xf32>
    %120 = math.exp %119 : vector<8x64xf32>
    %cst_23 = arith.constant 1.000000e+00 : f32
    %121 = vector.broadcast %cst_23 : f32 to vector<8x64xf32>
    %122 = arith.addf %121, %120 : vector<8x64xf32>
    %123 = arith.divf %121, %122 : vector<8x64xf32>
    %124 = arith.mulf %115, %102 : vector<8x64xf32>
    %125 = arith.mulf %114, %117 : vector<8x64xf32>
    %126 = arith.addf %124, %125 : vector<8x64xf32>
    %127 = math.tanh %126 : vector<8x64xf32>
    %128 = arith.mulf %123, %127 : vector<8x64xf32>
    %129 = vector.extract_strided_slice %5 {offsets = [40, 0], sizes = [8, 256], strides = [1, 1]} : vector<64x256xf32> to vector<8x256xf32>
    %cst_24 = arith.constant dense<0.000000e+00> : vector<8x256xf32>
    %130 = tpu.matmul %128, %6, %cst_24 {dimension_numbers = #tpu.dot_dimension_numbers<[1], [0], [0], [1], [0, 0, 1, 1], [], []>} : vector<8x64xf32>, vector<64x256xf32>, vector<8x256xf32> -> vector<8x256xf32>
    %131 = arith.addf %129, %130 : vector<8x256xf32>
    %132 = vector.extract_strided_slice %131 {offsets = [0, 0], sizes = [8, 128], strides = [1, 1]} : vector<8x256xf32> to vector<8x128xf32>
    %133 = arith.negf %132 : vector<8x128xf32>
    %134 = math.exp %133 : vector<8x128xf32>
    %cst_25 = arith.constant 1.000000e+00 : f32
    %135 = vector.broadcast %cst_25 : f32 to vector<8x128xf32>
    %136 = arith.addf %135, %134 : vector<8x128xf32>
    %137 = arith.divf %135, %136 : vector<8x128xf32>
    %138 = vector.extract_strided_slice %137 {offsets = [0, 0], sizes = [8, 64], strides = [1, 1]} : vector<8x128xf32> to vector<8x64xf32>
    %139 = vector.extract_strided_slice %137 {offsets = [0, 64], sizes = [8, 64], strides = [1, 1]} : vector<8x128xf32> to vector<8x64xf32>
    %140 = vector.extract_strided_slice %131 {offsets = [0, 128], sizes = [8, 64], strides = [1, 1]} : vector<8x256xf32> to vector<8x64xf32>
    %141 = math.tanh %140 : vector<8x64xf32>
    %142 = vector.extract_strided_slice %131 {offsets = [0, 192], sizes = [8, 64], strides = [1, 1]} : vector<8x256xf32> to vector<8x64xf32>
    %143 = arith.negf %142 : vector<8x64xf32>
    %144 = math.exp %143 : vector<8x64xf32>
    %cst_26 = arith.constant 1.000000e+00 : f32
    %145 = vector.broadcast %cst_26 : f32 to vector<8x64xf32>
    %146 = arith.addf %145, %144 : vector<8x64xf32>
    %147 = arith.divf %145, %146 : vector<8x64xf32>
    %148 = arith.mulf %139, %126 : vector<8x64xf32>
    %149 = arith.mulf %138, %141 : vector<8x64xf32>
    %150 = arith.addf %148, %149 : vector<8x64xf32>
    %151 = math.tanh %150 : vector<8x64xf32>
    %152 = arith.mulf %147, %151 : vector<8x64xf32>
    %153 = vector.extract_strided_slice %5 {offsets = [48, 0], sizes = [8, 256], strides = [1, 1]} : vector<64x256xf32> to vector<8x256xf32>
    %cst_27 = arith.constant dense<0.000000e+00> : vector<8x256xf32>
    %154 = tpu.matmul %152, %6, %cst_27 {dimension_numbers = #tpu.dot_dimension_numbers<[1], [0], [0], [1], [0, 0, 1, 1], [], []>} : vector<8x64xf32>, vector<64x256xf32>, vector<8x256xf32> -> vector<8x256xf32>
    %155 = arith.addf %153, %154 : vector<8x256xf32>
    %156 = vector.extract_strided_slice %155 {offsets = [0, 0], sizes = [8, 128], strides = [1, 1]} : vector<8x256xf32> to vector<8x128xf32>
    %157 = arith.negf %156 : vector<8x128xf32>
    %158 = math.exp %157 : vector<8x128xf32>
    %cst_28 = arith.constant 1.000000e+00 : f32
    %159 = vector.broadcast %cst_28 : f32 to vector<8x128xf32>
    %160 = arith.addf %159, %158 : vector<8x128xf32>
    %161 = arith.divf %159, %160 : vector<8x128xf32>
    %162 = vector.extract_strided_slice %161 {offsets = [0, 0], sizes = [8, 64], strides = [1, 1]} : vector<8x128xf32> to vector<8x64xf32>
    %163 = vector.extract_strided_slice %161 {offsets = [0, 64], sizes = [8, 64], strides = [1, 1]} : vector<8x128xf32> to vector<8x64xf32>
    %164 = vector.extract_strided_slice %155 {offsets = [0, 128], sizes = [8, 64], strides = [1, 1]} : vector<8x256xf32> to vector<8x64xf32>
    %165 = math.tanh %164 : vector<8x64xf32>
    %166 = vector.extract_strided_slice %155 {offsets = [0, 192], sizes = [8, 64], strides = [1, 1]} : vector<8x256xf32> to vector<8x64xf32>
    %167 = arith.negf %166 : vector<8x64xf32>
    %168 = math.exp %167 : vector<8x64xf32>
    %cst_29 = arith.constant 1.000000e+00 : f32
    %169 = vector.broadcast %cst_29 : f32 to vector<8x64xf32>
    %170 = arith.addf %169, %168 : vector<8x64xf32>
    %171 = arith.divf %169, %170 : vector<8x64xf32>
    %172 = arith.mulf %163, %150 : vector<8x64xf32>
    %173 = arith.mulf %162, %165 : vector<8x64xf32>
    %174 = arith.addf %172, %173 : vector<8x64xf32>
    %175 = math.tanh %174 : vector<8x64xf32>
    %176 = arith.mulf %171, %175 : vector<8x64xf32>
    %177 = vector.extract_strided_slice %5 {offsets = [56, 0], sizes = [8, 256], strides = [1, 1]} : vector<64x256xf32> to vector<8x256xf32>
    %cst_30 = arith.constant dense<0.000000e+00> : vector<8x256xf32>
    %178 = tpu.matmul %176, %6, %cst_30 {dimension_numbers = #tpu.dot_dimension_numbers<[1], [0], [0], [1], [0, 0, 1, 1], [], []>} : vector<8x64xf32>, vector<64x256xf32>, vector<8x256xf32> -> vector<8x256xf32>
    %179 = arith.addf %177, %178 : vector<8x256xf32>
    %180 = vector.extract_strided_slice %179 {offsets = [0, 0], sizes = [8, 128], strides = [1, 1]} : vector<8x256xf32> to vector<8x128xf32>
    %181 = arith.negf %180 : vector<8x128xf32>
    %182 = math.exp %181 : vector<8x128xf32>
    %cst_31 = arith.constant 1.000000e+00 : f32
    %183 = vector.broadcast %cst_31 : f32 to vector<8x128xf32>
    %184 = arith.addf %183, %182 : vector<8x128xf32>
    %185 = arith.divf %183, %184 : vector<8x128xf32>
    %186 = vector.extract_strided_slice %185 {offsets = [0, 0], sizes = [8, 64], strides = [1, 1]} : vector<8x128xf32> to vector<8x64xf32>
    %187 = vector.extract_strided_slice %185 {offsets = [0, 64], sizes = [8, 64], strides = [1, 1]} : vector<8x128xf32> to vector<8x64xf32>
    %188 = vector.extract_strided_slice %179 {offsets = [0, 128], sizes = [8, 64], strides = [1, 1]} : vector<8x256xf32> to vector<8x64xf32>
    %189 = math.tanh %188 : vector<8x64xf32>
    %190 = vector.extract_strided_slice %179 {offsets = [0, 192], sizes = [8, 64], strides = [1, 1]} : vector<8x256xf32> to vector<8x64xf32>
    %191 = arith.negf %190 : vector<8x64xf32>
    %192 = math.exp %191 : vector<8x64xf32>
    %cst_32 = arith.constant 1.000000e+00 : f32
    %193 = vector.broadcast %cst_32 : f32 to vector<8x64xf32>
    %194 = arith.addf %193, %192 : vector<8x64xf32>
    %195 = arith.divf %193, %194 : vector<8x64xf32>
    %196 = arith.mulf %187, %174 : vector<8x64xf32>
    %197 = arith.mulf %186, %189 : vector<8x64xf32>
    %198 = arith.addf %196, %197 : vector<8x64xf32>
    %199 = math.tanh %198 : vector<8x64xf32>
    %200 = arith.mulf %195, %199 : vector<8x64xf32>
    %c0_33 = arith.constant 0 : index
    %c0_34 = arith.constant 0 : index
    %c0_35 = arith.constant 0 : index
    %201 = vector.load %arg4[%c0_33, %c0_34, %c0_35] : memref<1x8x64xf32, #tpu.memory_space<vmem>>, vector<1x8x64xf32>
    %202 = vector.shape_cast %201 : vector<1x8x64xf32> to vector<8x64xf32>
    %203 = vector.shape_cast %200 : vector<8x64xf32> to vector<1x8x64xf32>
    tpu.vector_store %arg4[%c0_33, %c0_34, %c0_35], %203 {strides = array<i32>} : memref<1x8x64xf32, #tpu.memory_space<vmem>>, vector<1x8x64xf32>,
    return
  }
}

</mosaic_0001>

<llo_original>
// kernel: tpu_custom_call.1
$region0: #{tpu_custom_call.1}
  #allocation0 [shape = 'u32[]', space=smem, size = 0x4, offset = 0x4, fixed_abs, tag = 'smem constant byte address 0x4 - core index']
  #allocation1 [shape = 'u32[144,128]{1,0:T(1,128)}', space=vmem, size = 0x12000, scoped, tag = 'internal scratch']
  %s0 = inlined_call_operand.vmem [shape: f32[64,2], index: 0, kind: input, shape index: {}]
  %s1 = inlined_call_operand.vmem [shape: f32[2,256], index: 1, kind: input, shape index: {}]
  %s2 = inlined_call_operand.vmem [shape: f32[1,256], index: 2, kind: input, shape index: {}]
  %s3 = inlined_call_operand.hbm [shape: f32[64,256], index: 3, kind: input, shape index: {}]
  %s4 = inlined_call_operand.hbm [shape: f32[1,8,64], index: 4, kind: output, shape index: {}]
  %s5 = sld [smem:[#allocation0]]
  $region30: #{tpu_custom_call.1} parent=0
    _
  %s7 = ssub.s32 1, %s5
  %s8 = scalar_select 0, %s7, %s5
  $region1: #{tpu_custom_call.1} parent=0
    #allocation2 [shape = 'u8[65536]{0}', space=vmem, size = 0x10000, scoped, tag = 'input window, operand 3, single buffered']
    #allocation3 [shape = 's32[1]{0}', space=sflag, size = 0x4, scoped, tag = 'scoped memory for tpu_custom_call.1']
    #allocation4 [shape = 's32[1]{0}', space=sflag, size = 0x4, scoped, tag = 'scoped memory for tpu_custom_call.1']
    #allocation5 [shape = 'u8[4096]{0}', space=vmem, size = 0x1000, scoped, tag = 'output window, operand 0, single buffered']
    %9 = vsyncpa [#allocation3], 0
    %10 = vsyncpa [#allocation4], 0
    // Predicated region
    $region2: #{tpu_custom_call.1} parent=1 // pred_check
      _
    $region3: #{tpu_custom_call.1} parent=1 // pred_check_branch
      %12 = sbr.rel (0) target = $region5
    $region4: #{tpu_custom_call.1} parent=1 // pred_region
      _
    $region5: #{tpu_custom_call.1} parent=1 // pred_fallthru
      _
    // Predicated region
    $region6: #{tpu_custom_call.1} parent=1 // pred_check
      _
    $region7: #{tpu_custom_call.1} parent=1 // pred_check_branch
      %14 = sbr.rel (0) target = $region9
    $region8: #{tpu_custom_call.1} parent=1 // pred_region
      _
    $region9: #{tpu_custom_call.1} parent=1 // pred_fallthru
      _
    // Predicated region
    $region10: #{tpu_custom_call.1} parent=1 // pred_check
      _
    $region11: #{tpu_custom_call.1} parent=1 // pred_check_branch
      %16 = sbr.rel (0) target = $region13
    $region12: #{tpu_custom_call.1} parent=1 // pred_region
      _
    $region13: #{tpu_custom_call.1} parent=1 // pred_fallthru
      _
    // Predicated region
    $region14: #{tpu_custom_call.1} parent=1 // pred_check
      _
    $region15: #{tpu_custom_call.1} parent=1 // pred_check_branch
      %18 = sbr.rel (0) target = $region17
    $region16: #{tpu_custom_call.1} parent=1 // pred_region
      %s20 = ssub.s32 2048, 2048
      %21 = vsyncadd [#allocation3], %s20
      %s22 = sshll.u32 [#allocation2], 4
      %s23 = int_to_ptr.vmem [resolvable:$true] %s22
      %28 = dma.hbm_to_vmem [thread:$0]  %s3, 2048, %s23, [#allocation3], 256, 256, 16
    $region17: #{tpu_custom_call.1} parent=1 // pred_fallthru
      _
    // Predicated region
    $region18: #{tpu_custom_call.1} parent=1 // pred_check
      _
    $region19: #{tpu_custom_call.1} parent=1 // pred_check_branch
      %30 = sbr.rel (0) target = $region21
    $region20: #{tpu_custom_call.1} parent=1 // pred_region
      %31 = dma.done [#allocation3], 2048
    $region21: #{tpu_custom_call.1} parent=1 // pred_fallthru
      _
    %v32 = vld [vmem:[%s0] sm:$0xff]
    %v33 = vld [vmem:[%s0 + $0x8] sm:$0xff]
    %v34 = vld [vmem:[%s0 + $0x10] sm:$0xff]
    %v35 = vld [vmem:[%s0 + $0x18] sm:$0xff]
    %v36 = vld [vmem:[%s0 + $0x20] sm:$0xff]
    %v37 = vld [vmem:[%s0 + $0x28] sm:$0xff]
    %v38 = vld [vmem:[%s0 + $0x30] sm:$0xff]
    %v39 = vld [vmem:[%s0 + $0x38] sm:$0xff]
    %v40 = vld [vmem:[%s1] sm:$0xf]
    %v41 = vld [vmem:[%s2] sm:$0x3]
    %v43 = vlaneseq
    %v44 = vshrl.u32 %v43, 7
    %v45 = vsub.s32 0, %v44
    %v46 = vrot.slane %v41, %v45
    %v47 = vlaneseq
    %v48 = vshrl.u32 %v47, 7
    %v49 = vsub.s32 1, %v48
    %v50 = vrot.slane %v41, %v49
    %v55 = vunpack.c.l.s4 1983009808
    %v56 = vunpack.c.0.s8 %v55
    %v57 = vlaneseq
    %v58 = vshrl.u32 %v57, 7
    %v59 = vsub.s32 %v56, %v58
    %v60 = vrot.slane %v40, %v59
    %v61 = vcombine.high %v60, %v60
    %vm62 = vcmask 15360
    %v64 = vsel %vm62, %v32, 0
    %v67 = vsel %vm62, %v33, 0
    %v70 = vsel %vm62, %v34, 0
    %v73 = vsel %vm62, %v35, 0
    %v76 = vsel %vm62, %v36, 0
    %v79 = vsel %vm62, %v37, 0
    %v82 = vsel %vm62, %v38, 0
    %v85 = vsel %vm62, %v39, 0
    %vm87 = vcmask 1041408
    %v88 = vsel %vm87, %v60, 0
    %v90 = vsel %vm87, %v61, 0
    %92 = vmatprep.subr.mxu0 %v90
    %93 = vmatpush1.msra.mxu0 %v88
    %94 = vmatprep.subr.mxu0 0.0
    %95 = vmatpush1.msra.mxu0 0.0
    %96 = vmatprep.subr.mxu0 0.0
    %97 = vmatpush1.msra.mxu0 0.0
    %98 = vmatprep.subr.mxu0 0.0
    %99 = vmatpush1.msra.mxu0 0.0
    %100 = vmatprep.subr.mxu0 0.0
    %101 = vmatpush1.msra.mxu0 0.0
    %102 = vmatprep.subr.mxu0 0.0
    %103 = vmatpush1.msra.mxu0 0.0
    %104 = vmatprep.subr.mxu0 0.0
    %105 = vmatpush1.msra.mxu0 0.0
    %106 = vmatprep.subr.mxu0 0.0
    %107 = vmatpush1.msra.mxu0 0.0
    %108 = vmatprep.subr.mxu0 0.0
    %109 = vmatpush1.msra.mxu0 0.0
    %110 = vmatprep.subr.mxu0 0.0
    %111 = vmatpush1.msra.mxu0 0.0
    %112 = vmatprep.subr.mxu0 0.0
    %113 = vmatpush1.msra.mxu0 0.0
    %114 = vmatprep.subr.mxu0 0.0
    %115 = vmatpush1.msra.mxu0 0.0
    %116 = vmatprep.subr.mxu0 0.0
    %117 = vmatpush1.msra.mxu0 0.0
    %118 = vmatprep.subr.mxu0 0.0
    %119 = vmatpush1.msra.mxu0 0.0
    %120 = vmatprep.subr.mxu0 0.0
    %121 = vmatpush1.msra.mxu0 0.0
    %122 = vmatprep.subr.mxu0 0.0
    %123 = vmatpush1.msra.mxu0 0.0
    %124 = vmatprep.subr.mxu0 0.0
    %125 = vmatpush1.msra.mxu0 0.0
    %126 = vmatprep.subr.mxu0 0.0
    %127 = vmatpush1.msra.mxu0 0.0
    %128 = vmatprep.subr.mxu0 0.0
    %129 = vmatpush1.msra.mxu0 0.0
    %130 = vmatprep.subr.mxu0 0.0
    %131 = vmatpush1.msra.mxu0 0.0
    %132 = vmatprep.subr.mxu0 0.0
    %133 = vmatpush1.msra.mxu0 0.0
    %134 = vmatprep.subr.mxu0 0.0
    %135 = vmatpush1.msra.mxu0 0.0
    %136 = vmatprep.subr.mxu0 0.0
    %137 = vmatpush1.msra.mxu0 0.0
    %138 = vmatprep.subr.mxu0 0.0
    %139 = vmatpush1.msra.mxu0 0.0
    %140 = vmatprep.subr.mxu0 0.0
    %141 = vmatpush1.msra.mxu0 0.0
    %142 = vmatprep.subr.mxu0 0.0
    %143 = vmatpush1.msra.mxu0 0.0
    %144 = vmatprep.subr.mxu0 0.0
    %145 = vmatpush1.msra.mxu0 0.0
    %146 = vmatprep.subr.mxu0 0.0
    %147 = vmatpush1.msra.mxu0 0.0
    %148 = vmatprep.subr.mxu0 0.0
    %149 = vmatpush1.msra.mxu0 0.0
    %150 = vmatprep.subr.mxu0 0.0
    %151 = vmatpush1.msra.mxu0 0.0
    %152 = vmatprep.subr.mxu0 0.0
    %153 = vmatpush1.msra.mxu0 0.0
    %154 = vmatprep.subr.mxu0 0.0
    %155 = vmatpush1.msra.mxu0 0.0
    %156 = vmatprep.mubr.f32.mxu0 0.0
    %157 = vmatmul.mubr.f32.gmra.mrb[0].mxu0 %v64
    %v158 = vpop.f32.mrb[0].mxu0
    %v159 = vadd.f32 %v46, %v158
    %v160 = vpop.f32.mrb[0].mxu0
    %v161 = vadd.f32 %v50, %v160
    %162 = vmatprep.mubr.f32.mxu0 0.0
    %163 = vmatmul.mubr.f32.gmra.mrb[0].mxu0 %v67
    %v164 = vpop.f32.mrb[0].mxu0
    %v165 = vadd.f32 %v46, %v164
    %v166 = vpop.f32.mrb[0].mxu0
    %v167 = vadd.f32 %v50, %v166
    %168 = vmatprep.mubr.f32.mxu0 0.0
    %169 = vmatmul.mubr.f32.gmra.mrb[0].mxu0 %v70
    %v170 = vpop.f32.mrb[0].mxu0
    %v171 = vadd.f32 %v46, %v170
    %v172 = vpop.f32.mrb[0].mxu0
    %v173 = vadd.f32 %v50, %v172
    %174 = vmatprep.mubr.f32.mxu0 0.0
    %175 = vmatmul.mubr.f32.gmra.mrb[0].mxu0 %v73
    %v176 = vpop.f32.mrb[0].mxu0
    %v177 = vadd.f32 %v46, %v176
    %v178 = vpop.f32.mrb[0].mxu0
    %v179 = vadd.f32 %v50, %v178
    %180 = vmatprep.mubr.f32.mxu0 0.0
    %181 = vmatmul.mubr.f32.gmra.mrb[0].mxu0 %v76
    %v182 = vpop.f32.mrb[0].mxu0
    %v183 = vadd.f32 %v46, %v182
    %v184 = vpop.f32.mrb[0].mxu0
    %v185 = vadd.f32 %v50, %v184
    %186 = vmatprep.mubr.f32.mxu0 0.0
    %187 = vmatmul.mubr.f32.gmra.mrb[0].mxu0 %v79
    %v188 = vpop.f32.mrb[0].mxu0
    %v189 = vadd.f32 %v46, %v188
    %v190 = vpop.f32.mrb[0].mxu0
    %v191 = vadd.f32 %v50, %v190
    %192 = vmatprep.mubr.f32.mxu0 0.0
    %193 = vmatmul.mubr.f32.gmra.mrb[0].mxu0 %v82
    %v194 = vpop.f32.mrb[0].mxu0
    %v195 = vadd.f32 %v46, %v194
    %v196 = vpop.f32.mrb[0].mxu0
    %v197 = vadd.f32 %v50, %v196
    %198 = vmatprep.mubr.f32.mxu0 0.0
    %199 = vmatmul.mubr.f32.gmra.mrb[0].mxu0 %v85
    %v200 = vpop.f32.mrb[0].mxu0
    %v201 = vadd.f32 %v46, %v200
    %v202 = vpop.f32.mrb[0].mxu0
    %v203 = vadd.f32 %v50, %v202
    %204 = vdwg.mxu0
    %v205 = vld [vmem:[#allocation2] sm:$0xff]
    %v206 = vld [vmem:[#allocation2 + $0x8] sm:$0xff]
    %v207 = vld [vmem:[#allocation2 + $0x10] sm:$0xff]
    %v208 = vld [vmem:[#allocation2 + $0x18] sm:$0xff]
    %v209 = vld [vmem:[#allocation2 + $0x20] sm:$0xff]
    %v210 = vld [vmem:[#allocation2 + $0x28] sm:$0xff]
    %v211 = vld [vmem:[#allocation2 + $0x30] sm:$0xff]
    %v212 = vld [vmem:[#allocation2 + $0x38] sm:$0xff]
    %v213 = vld [vmem:[#allocation2 + $0x40] sm:$0xff]
    %v214 = vld [vmem:[#allocation2 + $0x48] sm:$0xff]
    %v215 = vld [vmem:[#allocation2 + $0x50] sm:$0xff]
    %v216 = vld [vmem:[#allocation2 + $0x58] sm:$0xff]
    %v217 = vld [vmem:[#allocation2 + $0x60] sm:$0xff]
    %v218 = vld [vmem:[#allocation2 + $0x68] sm:$0xff]
    %v219 = vld [vmem:[#allocation2 + $0x70] sm:$0xff]
    %v220 = vld [vmem:[#allocation2 + $0x78] sm:$0xff]
    %vm221 = vcmask 523264
    %v223 = vsel %vm221, 0.0, 0
    %225 = vmatprep.subr.mxu0 %v206
    %226 = vmatpush1.msra.mxu0 %v205
    %227 = vmatprep.subr.mxu0 %v208
    %228 = vmatpush1.msra.mxu0 %v207
    %229 = vmatprep.subr.mxu0 %v210
    %230 = vmatpush1.msra.mxu0 %v209
    %231 = vmatprep.subr.mxu0 %v212
    %232 = vmatpush1.msra.mxu0 %v211
    %233 = vmatprep.subr.mxu0 %v214
    %234 = vmatpush1.msra.mxu0 %v213
    %235 = vmatprep.subr.mxu0 %v216
    %236 = vmatpush1.msra.mxu0 %v215
    %237 = vmatprep.subr.mxu0 %v218
    %238 = vmatpush1.msra.mxu0 %v217
    %239 = vmatprep.subr.mxu0 %v220
    %240 = vmatpush1.msra.mxu0 %v219
    %241 = vmatprep.subr.mxu0 0.0
    %242 = vmatpush1.msra.mxu0 0.0
    %243 = vmatprep.subr.mxu0 0.0
    %244 = vmatpush1.msra.mxu0 0.0
    %245 = vmatprep.subr.mxu0 0.0
    %246 = vmatpush1.msra.mxu0 0.0
    %247 = vmatprep.subr.mxu0 0.0
    %248 = vmatpush1.msra.mxu0 0.0
    %249 = vmatprep.subr.mxu0 0.0
    %250 = vmatpush1.msra.mxu0 0.0
    %251 = vmatprep.subr.mxu0 0.0
    %252 = vmatpush1.msra.mxu0 0.0
    %253 = vmatprep.subr.mxu0 0.0
    %254 = vmatpush1.msra.mxu0 0.0
    %255 = vmatprep.subr.mxu0 0.0
    %256 = vmatpush1.msra.mxu0 0.0
    %257 = vmatprep.subr.mxu0 0.0
    %258 = vmatpush1.msra.mxu0 0.0
    %259 = vmatprep.subr.mxu0 0.0
    %260 = vmatpush1.msra.mxu0 0.0
    %261 = vmatprep.subr.mxu0 0.0
    %262 = vmatpush1.msra.mxu0 0.0
    %263 = vmatprep.subr.mxu0 0.0
    %264 = vmatpush1.msra.mxu0 0.0
    %265 = vmatprep.subr.mxu0 0.0
    %266 = vmatpush1.msra.mxu0 0.0
    %267 = vmatprep.subr.mxu0 0.0
    %268 = vmatpush1.msra.mxu0 0.0
    %269 = vmatprep.subr.mxu0 0.0
    %270 = vmatpush1.msra.mxu0 0.0
    %271 = vmatprep.subr.mxu0 0.0
    %272 = vmatpush1.msra.mxu0 0.0
    %273 = vmatprep.subr.mxu0 0.0
    %274 = vmatpush1.msra.mxu0 0.0
    %275 = vmatprep.subr.mxu0 0.0
    %276 = vmatpush1.msra.mxu0 0.0
    %277 = vmatprep.subr.mxu0 0.0
    %278 = vmatpush1.msra.mxu0 0.0
    %279 = vmatprep.subr.mxu0 0.0
    %280 = vmatpush1.msra.mxu0 0.0
    %281 = vmatprep.subr.mxu0 0.0
    %282 = vmatpush1.msra.mxu0 0.0
    %283 = vmatprep.subr.mxu0 0.0
    %284 = vmatpush1.msra.mxu0 0.0
    %285 = vmatprep.subr.mxu0 0.0
    %286 = vmatpush1.msra.mxu0 0.0
    %287 = vmatprep.subr.mxu0 0.0
    %288 = vmatpush1.msra.mxu0 0.0
    %289 = vmatprep.mubr.f32.mxu0 0.0
    %290 = vmatmul.mubr.f32.gmra.mrb[0].mxu0 %v223
    %v291 = vpop.f32.mrb[0].mxu0
    %v292 = vadd.f32 0.0, %v291
    %v293 = vpop.f32.mrb[0].mxu0
    %v294 = vadd.f32 0.0, %v293
    %295 = vdwg.mxu0
    %v296 = vadd.f32 %v159, %v292
    %v297 = vadd.f32 %v161, %v294
    %v298 = vxor.u32 %v296, 2147483648
    %v299 = vmul.f32 %v298, 1.442695
    %v300 = vpow.pop %v299
    %v301 = vadd.f32 %v300, 1.0
    %v302 = vrcp.pop %v301
    %v303 = vmul.f32 1.0, %v302
    %v304 = vtanh.pop %v297
    %v305 = vxor.u32 %v297, 2147483648
    %v306 = vmul.f32 %v305, 1.442695
    %v307 = vpow.pop %v306
    %v308 = vadd.f32 %v307, 1.0
    %v309 = vrcp.pop %v308
    %v310 = vmul.f32 1.0, %v309
    %v311 = vmul.f32 %v303, 0.0
    %v312 = vmul.f32 %v303, %v304
    %314 = vrot.lane.b32.xlu0 %v312, 64
    %v315 = vpop.permute.xlu0 %314
    %v317 = vadd.f32 %v311, %v315
    %v318 = vtanh.pop %v317
    %v319 = vmul.f32 %v310, %v318
    %321 = vrot.lane.b32.xlu0 %v319, 64
    %v322 = vpop.permute.xlu0 %321
    %v323 = vsel %vm221, %v322, 0
    %325 = vmatprep.subr.mxu0 %v206
    %326 = vmatpush1.msra.mxu0 %v205
    %327 = vmatprep.subr.mxu0 %v208
    %328 = vmatpush1.msra.mxu0 %v207
    %329 = vmatprep.subr.mxu0 %v210
    %330 = vmatpush1.msra.mxu0 %v209
    %331 = vmatprep.subr.mxu0 %v212
    %332 = vmatpush1.msra.mxu0 %v211
    %333 = vmatprep.subr.mxu0 %v214
    %334 = vmatpush1.msra.mxu0 %v213
    %335 = vmatprep.subr.mxu0 %v216
    %336 = vmatpush1.msra.mxu0 %v215
    %337 = vmatprep.subr.mxu0 %v218
    %338 = vmatpush1.msra.mxu0 %v217
    %339 = vmatprep.subr.mxu0 %v220
    %340 = vmatpush1.msra.mxu0 %v219
    %341 = vmatprep.subr.mxu0 0.0
    %342 = vmatpush1.msra.mxu0 0.0
    %343 = vmatprep.subr.mxu0 0.0
    %344 = vmatpush1.msra.mxu0 0.0
    %345 = vmatprep.subr.mxu0 0.0
    %346 = vmatpush1.msra.mxu0 0.0
    %347 = vmatprep.subr.mxu0 0.0
    %348 = vmatpush1.msra.mxu0 0.0
    %349 = vmatprep.subr.mxu0 0.0
    %350 = vmatpush1.msra.mxu0 0.0
    %351 = vmatprep.subr.mxu0 0.0
    %352 = vmatpush1.msra.mxu0 0.0
    %353 = vmatprep.subr.mxu0 0.0
    %354 = vmatpush1.msra.mxu0 0.0
    %355 = vmatprep.subr.mxu0 0.0
    %356 = vmatpush1.msra.mxu0 0.0
    %357 = vmatprep.subr.mxu0 0.0
    %358 = vmatpush1.msra.mxu0 0.0
    %359 = vmatprep.subr.mxu0 0.0
    %360 = vmatpush1.msra.mxu0 0.0
    %361 = vmatprep.subr.mxu0 0.0
    %362 = vmatpush1.msra.mxu0 0.0
    %363 = vmatprep.subr.mxu0 0.0
    %364 = vmatpush1.msra.mxu0 0.0
    %365 = vmatprep.subr.mxu0 0.0
    %366 = vmatpush1.msra.mxu0 0.0
    %367 = vmatprep.subr.mxu0 0.0
    %368 = vmatpush1.msra.mxu0 0.0
    %369 = vmatprep.subr.mxu0 0.0
    %370 = vmatpush1.msra.mxu0 0.0
    %371 = vmatprep.subr.mxu0 0.0
    %372 = vmatpush1.msra.mxu0 0.0
    %373 = vmatprep.subr.mxu0 0.0
    %374 = vmatpush1.msra.mxu0 0.0
    %375 = vmatprep.subr.mxu0 0.0
    %376 = vmatpush1.msra.mxu0 0.0
    %377 = vmatprep.subr.mxu0 0.0
    %378 = vmatpush1.msra.mxu0 0.0
    %379 = vmatprep.subr.mxu0 0.0
    %380 = vmatpush1.msra.mxu0 0.0
    %381 = vmatprep.subr.mxu0 0.0
    %382 = vmatpush1.msra.mxu0 0.0
    %383 = vmatprep.subr.mxu0 0.0
    %384 = vmatpush1.msra.mxu0 0.0
    %385 = vmatprep.subr.mxu0 0.0
    %386 = vmatpush1.msra.mxu0 0.0
    %387 = vmatprep.subr.mxu0 0.0
    %388 = vmatpush1.msra.mxu0 0.0
    %389 = vmatprep.mubr.f32.mxu0 0.0
    %390 = vmatmul.mubr.f32.gmra.mrb[0].mxu0 %v323
    %v391 = vpop.f32.mrb[0].mxu0
    %v392 = vadd.f32 0.0, %v391
    %v393 = vpop.f32.mrb[0].mxu0
    %v394 = vadd.f32 0.0, %v393
    %395 = vdwg.mxu0
    %v396 = vadd.f32 %v165, %v392
    %v397 = vadd.f32 %v167, %v394
    %v398 = vxor.u32 %v396, 2147483648
    %v399 = vmul.f32 %v398, 1.442695
    %v400 = vpow.pop %v399
    %v401 = vadd.f32 %v400, 1.0
    %v402 = vrcp.pop %v401
    %v403 = vmul.f32 1.0, %v402
    %v404 = vtanh.pop %v397
    %v405 = vxor.u32 %v397, 2147483648
    %v406 = vmul.f32 %v405, 1.442695
    %v407 = vpow.pop %v406
    %v408 = vadd.f32 %v407, 1.0
    %v409 = vrcp.pop %v408
    %v410 = vmul.f32 1.0, %v409
    %v411 = vmul.f32 %v403, %v317
    %v412 = vmul.f32 %v403, %v404
    %414 = vrot.lane.b32.xlu0 %v412, 64
    %v415 = vpop.permute.xlu0 %414
    %v417 = vadd.f32 %v411, %v415
    %v418 = vtanh.pop %v417
    %v419 = vmul.f32 %v410, %v418
    %421 = vrot.lane.b32.xlu0 %v419, 64
    %v422 = vpop.permute.xlu0 %421
    %v423 = vsel %vm221, %v422, 0
    %425 = vmatprep.subr.mxu0 %v206
    %426 = vmatpush1.msra.mxu0 %v205
    %427 = vmatprep.subr.mxu0 %v208
    %428 = vmatpush1.msra.mxu0 %v207
    %429 = vmatprep.subr.mxu0 %v210
    %430 = vmatpush1.msra.mxu0 %v209
    %431 = vmatprep.subr.mxu0 %v212
    %432 = vmatpush1.msra.mxu0 %v211
    %433 = vmatprep.subr.mxu0 %v214
    %434 = vmatpush1.msra.mxu0 %v213
    %435 = vmatprep.subr.mxu0 %v216
    %436 = vmatpush1.msra.mxu0 %v215
    %437 = vmatprep.subr.mxu0 %v218
    %438 = vmatpush1.msra.mxu0 %v217
    %439 = vmatprep.subr.mxu0 %v220
    %440 = vmatpush1.msra.mxu0 %v219
    %441 = vmatprep.subr.mxu0 0.0
    %442 = vmatpush1.msra.mxu0 0.0
    %443 = vmatprep.subr.mxu0 0.0
    %444 = vmatpush1.msra.mxu0 0.0
    %445 = vmatprep.subr.mxu0 0.0
    %446 = vmatpush1.msra.mxu0 0.0
    %447 = vmatprep.subr.mxu0 0.0
    %448 = vmatpush1.msra.mxu0 0.0
    %449 = vmatprep.subr.mxu0 0.0
    %450 = vmatpush1.msra.mxu0 0.0
    %451 = vmatprep.subr.mxu0 0.0
    %452 = vmatpush1.msra.mxu0 0.0
    %453 = vmatprep.subr.mxu0 0.0
    %454 = vmatpush1.msra.mxu0 0.0
    %455 = vmatprep.subr.mxu0 0.0
    %456 = vmatpush1.msra.mxu0 0.0
    %457 = vmatprep.subr.mxu0 0.0
    %458 = vmatpush1.msra.mxu0 0.0
    %459 = vmatprep.subr.mxu0 0.0
    %460 = vmatpush1.msra.mxu0 0.0
    %461 = vmatprep.subr.mxu0 0.0
    %462 = vmatpush1.msra.mxu0 0.0
    %463 = vmatprep.subr.mxu0 0.0
    %464 = vmatpush1.msra.mxu0 0.0
    %465 = vmatprep.subr.mxu0 0.0
    %466 = vmatpush1.msra.mxu0 0.0
    %467 = vmatprep.subr.mxu0 0.0
    %468 = vmatpush1.msra.mxu0 0.0
    %469 = vmatprep.subr.mxu0 0.0
    %470 = vmatpush1.msra.mxu0 0.0
    %471 = vmatprep.subr.mxu0 0.0
    %472 = vmatpush1.msra.mxu0 0.0
    %473 = vmatprep.subr.mxu0 0.0
    %474 = vmatpush1.msra.mxu0 0.0
    %475 = vmatprep.subr.mxu0 0.0
    %476 = vmatpush1.msra.mxu0 0.0
    %477 = vmatprep.subr.mxu0 0.0
    %478 = vmatpush1.msra.mxu0 0.0
    %479 = vmatprep.subr.mxu0 0.0
    %480 = vmatpush1.msra.mxu0 0.0
    %481 = vmatprep.subr.mxu0 0.0
    %482 = vmatpush1.msra.mxu0 0.0
    %483 = vmatprep.subr.mxu0 0.0
    %484 = vmatpush1.msra.mxu0 0.0
    %485 = vmatprep.subr.mxu0 0.0
    %486 = vmatpush1.msra.mxu0 0.0
    %487 = vmatprep.subr.mxu0 0.0
    %488 = vmatpush1.msra.mxu0 0.0
    %489 = vmatprep.mubr.f32.mxu0 0.0
    %490 = vmatmul.mubr.f32.gmra.mrb[0].mxu0 %v423
    %v491 = vpop.f32.mrb[0].mxu0
    %v492 = vadd.f32 0.0, %v491
    %v493 = vpop.f32.mrb[0].mxu0
    %v494 = vadd.f32 0.0, %v493
    %495 = vdwg.mxu0
    %v496 = vadd.f32 %v171, %v492
    %v497 = vadd.f32 %v173, %v494
    %v498 = vxor.u32 %v496, 2147483648
    %v499 = vmul.f32 %v498, 1.442695
    %v500 = vpow.pop %v499
    %v501 = vadd.f32 %v500, 1.0
    %v502 = vrcp.pop %v501
    %v503 = vmul.f32 1.0, %v502
    %v504 = vtanh.pop %v497
    %v505 = vxor.u32 %v497, 2147483648
    %v506 = vmul.f32 %v505, 1.442695
    %v507 = vpow.pop %v506
    %v508 = vadd.f32 %v507, 1.0
    %v509 = vrcp.pop %v508
    %v510 = vmul.f32 1.0, %v509
    %v511 = vmul.f32 %v503, %v417
    %v512 = vmul.f32 %v503, %v504
    %514 = vrot.lane.b32.xlu0 %v512, 64
    %v515 = vpop.permute.xlu0 %514
    %v517 = vadd.f32 %v511, %v515
    %v518 = vtanh.pop %v517
    %v519 = vmul.f32 %v510, %v518
    %521 = vrot.lane.b32.xlu0 %v519, 64
    %v522 = vpop.permute.xlu0 %521
    %v523 = vsel %vm221, %v522, 0
    %525 = vmatprep.subr.mxu0 %v206
    %526 = vmatpush1.msra.mxu0 %v205
    %527 = vmatprep.subr.mxu0 %v208
    %528 = vmatpush1.msra.mxu0 %v207
    %529 = vmatprep.subr.mxu0 %v210
    %530 = vmatpush1.msra.mxu0 %v209
    %531 = vmatprep.subr.mxu0 %v212
    %532 = vmatpush1.msra.mxu0 %v211
    %533 = vmatprep.subr.mxu0 %v214
    %534 = vmatpush1.msra.mxu0 %v213
    %535 = vmatprep.subr.mxu0 %v216
    %536 = vmatpush1.msra.mxu0 %v215
    %537 = vmatprep.subr.mxu0 %v218
    %538 = vmatpush1.msra.mxu0 %v217
    %539 = vmatprep.subr.mxu0 %v220
    %540 = vmatpush1.msra.mxu0 %v219
    %541 = vmatprep.subr.mxu0 0.0
    %542 = vmatpush1.msra.mxu0 0.0
    %543 = vmatprep.subr.mxu0 0.0
    %544 = vmatpush1.msra.mxu0 0.0
    %545 = vmatprep.subr.mxu0 0.0
    %546 = vmatpush1.msra.mxu0 0.0
    %547 = vmatprep.subr.mxu0 0.0
    %548 = vmatpush1.msra.mxu0 0.0
    %549 = vmatprep.subr.mxu0 0.0
    %550 = vmatpush1.msra.mxu0 0.0
    %551 = vmatprep.subr.mxu0 0.0
    %552 = vmatpush1.msra.mxu0 0.0
    %553 = vmatprep.subr.mxu0 0.0
    %554 = vmatpush1.msra.mxu0 0.0
    %555 = vmatprep.subr.mxu0 0.0
    %556 = vmatpush1.msra.mxu0 0.0
    %557 = vmatprep.subr.mxu0 0.0
    %558 = vmatpush1.msra.mxu0 0.0
    %559 = vmatprep.subr.mxu0 0.0
    %560 = vmatpush1.msra.mxu0 0.0
    %561 = vmatprep.subr.mxu0 0.0
    %562 = vmatpush1.msra.mxu0 0.0
    %563 = vmatprep.subr.mxu0 0.0
    %564 = vmatpush1.msra.mxu0 0.0
    %565 = vmatprep.subr.mxu0 0.0
    %566 = vmatpush1.msra.mxu0 0.0
    %567 = vmatprep.subr.mxu0 0.0
    %568 = vmatpush1.msra.mxu0 0.0
    %569 = vmatprep.subr.mxu0 0.0
    %570 = vmatpush1.msra.mxu0 0.0
    %571 = vmatprep.subr.mxu0 0.0
    %572 = vmatpush1.msra.mxu0 0.0
    %573 = vmatprep.subr.mxu0 0.0
    %574 = vmatpush1.msra.mxu0 0.0
    %575 = vmatprep.subr.mxu0 0.0
    %576 = vmatpush1.msra.mxu0 0.0
    %577 = vmatprep.subr.mxu0 0.0
    %578 = vmatpush1.msra.mxu0 0.0
    %579 = vmatprep.subr.mxu0 0.0
    %580 = vmatpush1.msra.mxu0 0.0
    %581 = vmatprep.subr.mxu0 0.0
    %582 = vmatpush1.msra.mxu0 0.0
    %583 = vmatprep.subr.mxu0 0.0
    %584 = vmatpush1.msra.mxu0 0.0
    %585 = vmatprep.subr.mxu0 0.0
    %586 = vmatpush1.msra.mxu0 0.0
    %587 = vmatprep.subr.mxu0 0.0
    %588 = vmatpush1.msra.mxu0 0.0
    %589 = vmatprep.mubr.f32.mxu0 0.0
    %590 = vmatmul.mubr.f32.gmra.mrb[0].mxu0 %v523
    %v591 = vpop.f32.mrb[0].mxu0
    %v592 = vadd.f32 0.0, %v591
    %v593 = vpop.f32.mrb[0].mxu0
    %v594 = vadd.f32 0.0, %v593
    %595 = vdwg.mxu0
    %v596 = vadd.f32 %v177, %v592
    %v597 = vadd.f32 %v179, %v594
    %v598 = vxor.u32 %v596, 2147483648
    %v599 = vmul.f32 %v598, 1.442695
    %v600 = vpow.pop %v599
    %v601 = vadd.f32 %v600, 1.0
    %v602 = vrcp.pop %v601
    %v603 = vmul.f32 1.0, %v602
    %v604 = vtanh.pop %v597
    %v605 = vxor.u32 %v597, 2147483648
    %v606 = vmul.f32 %v605, 1.442695
    %v607 = vpow.pop %v606
    %v608 = vadd.f32 %v607, 1.0
    %v609 = vrcp.pop %v608
    %v610 = vmul.f32 1.0, %v609
    %v611 = vmul.f32 %v603, %v517
    %v612 = vmul.f32 %v603, %v604
    %614 = vrot.lane.b32.xlu0 %v612, 64
    %v615 = vpop.permute.xlu0 %614
    %v617 = vadd.f32 %v611, %v615
    %v618 = vtanh.pop %v617
    %v619 = vmul.f32 %v610, %v618
    %621 = vrot.lane.b32.xlu0 %v619, 64
    %v622 = vpop.permute.xlu0 %621
    %v623 = vsel %vm221, %v622, 0
    %625 = vmatprep.subr.mxu0 %v206
    %626 = vmatpush1.msra.mxu0 %v205
    %627 = vmatprep.subr.mxu0 %v208
    %628 = vmatpush1.msra.mxu0 %v207
    %629 = vmatprep.subr.mxu0 %v210
    %630 = vmatpush1.msra.mxu0 %v209
    %631 = vmatprep.subr.mxu0 %v212
    %632 = vmatpush1.msra.mxu0 %v211
    %633 = vmatprep.subr.mxu0 %v214
    %634 = vmatpush1.msra.mxu0 %v213
    %635 = vmatprep.subr.mxu0 %v216
    %636 = vmatpush1.msra.mxu0 %v215
    %637 = vmatprep.subr.mxu0 %v218
    %638 = vmatpush1.msra.mxu0 %v217
    %639 = vmatprep.subr.mxu0 %v220
    %640 = vmatpush1.msra.mxu0 %v219
    %641 = vmatprep.subr.mxu0 0.0
    %642 = vmatpush1.msra.mxu0 0.0
    %643 = vmatprep.subr.mxu0 0.0
    %644 = vmatpush1.msra.mxu0 0.0
    %645 = vmatprep.subr.mxu0 0.0
    %646 = vmatpush1.msra.mxu0 0.0
    %647 = vmatprep.subr.mxu0 0.0
    %648 = vmatpush1.msra.mxu0 0.0
    %649 = vmatprep.subr.mxu0 0.0
    %650 = vmatpush1.msra.mxu0 0.0
    %651 = vmatprep.subr.mxu0 0.0
    %652 = vmatpush1.msra.mxu0 0.0
    %653 = vmatprep.subr.mxu0 0.0
    %654 = vmatpush1.msra.mxu0 0.0
    %655 = vmatprep.subr.mxu0 0.0
    %656 = vmatpush1.msra.mxu0 0.0
    %657 = vmatprep.subr.mxu0 0.0
    %658 = vmatpush1.msra.mxu0 0.0
    %659 = vmatprep.subr.mxu0 0.0
    %660 = vmatpush1.msra.mxu0 0.0
    %661 = vmatprep.subr.mxu0 0.0
    %662 = vmatpush1.msra.mxu0 0.0
    %663 = vmatprep.subr.mxu0 0.0
    %664 = vmatpush1.msra.mxu0 0.0
    %665 = vmatprep.subr.mxu0 0.0
    %666 = vmatpush1.msra.mxu0 0.0
    %667 = vmatprep.subr.mxu0 0.0
    %668 = vmatpush1.msra.mxu0 0.0
    %669 = vmatprep.subr.mxu0 0.0
    %670 = vmatpush1.msra.mxu0 0.0
    %671 = vmatprep.subr.mxu0 0.0
    %672 = vmatpush1.msra.mxu0 0.0
    %673 = vmatprep.subr.mxu0 0.0
    %674 = vmatpush1.msra.mxu0 0.0
    %675 = vmatprep.subr.mxu0 0.0
    %676 = vmatpush1.msra.mxu0 0.0
    %677 = vmatprep.subr.mxu0 0.0
    %678 = vmatpush1.msra.mxu0 0.0
    %679 = vmatprep.subr.mxu0 0.0
    %680 = vmatpush1.msra.mxu0 0.0
    %681 = vmatprep.subr.mxu0 0.0
    %682 = vmatpush1.msra.mxu0 0.0
    %683 = vmatprep.subr.mxu0 0.0
    %684 = vmatpush1.msra.mxu0 0.0
    %685 = vmatprep.subr.mxu0 0.0
    %686 = vmatpush1.msra.mxu0 0.0
    %687 = vmatprep.subr.mxu0 0.0
    %688 = vmatpush1.msra.mxu0 0.0
    %689 = vmatprep.mubr.f32.mxu0 0.0
    %690 = vmatmul.mubr.f32.gmra.mrb[0].mxu0 %v623
    %v691 = vpop.f32.mrb[0].mxu0
    %v692 = vadd.f32 0.0, %v691
    %v693 = vpop.f32.mrb[0].mxu0
    %v694 = vadd.f32 0.0, %v693
    %695 = vdwg.mxu0
    %v696 = vadd.f32 %v183, %v692
    %v697 = vadd.f32 %v185, %v694
    %v698 = vxor.u32 %v696, 2147483648
    %v699 = vmul.f32 %v698, 1.442695
    %v700 = vpow.pop %v699
    %v701 = vadd.f32 %v700, 1.0
    %v702 = vrcp.pop %v701
    %v703 = vmul.f32 1.0, %v702
    %v704 = vtanh.pop %v697
    %v705 = vxor.u32 %v697, 2147483648
    %v706 = vmul.f32 %v705, 1.442695
    %v707 = vpow.pop %v706
    %v708 = vadd.f32 %v707, 1.0
    %v709 = vrcp.pop %v708
    %v710 = vmul.f32 1.0, %v709
    %v711 = vmul.f32 %v703, %v617
    %v712 = vmul.f32 %v703, %v704
    %714 = vrot.lane.b32.xlu0 %v712, 64
    %v715 = vpop.permute.xlu0 %714
    %v717 = vadd.f32 %v711, %v715
    %v718 = vtanh.pop %v717
    %v719 = vmul.f32 %v710, %v718
    %721 = vrot.lane.b32.xlu0 %v719, 64
    %v722 = vpop.permute.xlu0 %721
    %v723 = vsel %vm221, %v722, 0
    %725 = vmatprep.subr.mxu0 %v206
    %726 = vmatpush1.msra.mxu0 %v205
    %727 = vmatprep.subr.mxu0 %v208
    %728 = vmatpush1.msra.mxu0 %v207
    %729 = vmatprep.subr.mxu0 %v210
    %730 = vmatpush1.msra.mxu0 %v209
    %731 = vmatprep.subr.mxu0 %v212
    %732 = vmatpush1.msra.mxu0 %v211
    %733 = vmatprep.subr.mxu0 %v214
    %734 = vmatpush1.msra.mxu0 %v213
    %735 = vmatprep.subr.mxu0 %v216
    %736 = vmatpush1.msra.mxu0 %v215
    %737 = vmatprep.subr.mxu0 %v218
    %738 = vmatpush1.msra.mxu0 %v217
    %739 = vmatprep.subr.mxu0 %v220
    %740 = vmatpush1.msra.mxu0 %v219
    %741 = vmatprep.subr.mxu0 0.0
    %742 = vmatpush1.msra.mxu0 0.0
    %743 = vmatprep.subr.mxu0 0.0
    %744 = vmatpush1.msra.mxu0 0.0
    %745 = vmatprep.subr.mxu0 0.0
    %746 = vmatpush1.msra.mxu0 0.0
    %747 = vmatprep.subr.mxu0 0.0
    %748 = vmatpush1.msra.mxu0 0.0
    %749 = vmatprep.subr.mxu0 0.0
    %750 = vmatpush1.msra.mxu0 0.0
    %751 = vmatprep.subr.mxu0 0.0
    %752 = vmatpush1.msra.mxu0 0.0
    %753 = vmatprep.subr.mxu0 0.0
    %754 = vmatpush1.msra.mxu0 0.0
    %755 = vmatprep.subr.mxu0 0.0
    %756 = vmatpush1.msra.mxu0 0.0
    %757 = vmatprep.subr.mxu0 0.0
    %758 = vmatpush1.msra.mxu0 0.0
    %759 = vmatprep.subr.mxu0 0.0
    %760 = vmatpush1.msra.mxu0 0.0
    %761 = vmatprep.subr.mxu0 0.0
    %762 = vmatpush1.msra.mxu0 0.0
    %763 = vmatprep.subr.mxu0 0.0
    %764 = vmatpush1.msra.mxu0 0.0
    %765 = vmatprep.subr.mxu0 0.0
    %766 = vmatpush1.msra.mxu0 0.0
    %767 = vmatprep.subr.mxu0 0.0
    %768 = vmatpush1.msra.mxu0 0.0
    %769 = vmatprep.subr.mxu0 0.0
    %770 = vmatpush1.msra.mxu0 0.0
    %771 = vmatprep.subr.mxu0 0.0
    %772 = vmatpush1.msra.mxu0 0.0
    %773 = vmatprep.subr.mxu0 0.0
    %774 = vmatpush1.msra.mxu0 0.0
    %775 = vmatprep.subr.mxu0 0.0
    %776 = vmatpush1.msra.mxu0 0.0
    %777 = vmatprep.subr.mxu0 0.0
    %778 = vmatpush1.msra.mxu0 0.0
    %779 = vmatprep.subr.mxu0 0.0
    %780 = vmatpush1.msra.mxu0 0.0
    %781 = vmatprep.subr.mxu0 0.0
    %782 = vmatpush1.msra.mxu0 0.0
    %783 = vmatprep.subr.mxu0 0.0
    %784 = vmatpush1.msra.mxu0 0.0
    %785 = vmatprep.subr.mxu0 0.0
    %786 = vmatpush1.msra.mxu0 0.0
    %787 = vmatprep.subr.mxu0 0.0
    %788 = vmatpush1.msra.mxu0 0.0
    %789 = vmatprep.mubr.f32.mxu0 0.0
    %790 = vmatmul.mubr.f32.gmra.mrb[0].mxu0 %v723
    %v791 = vpop.f32.mrb[0].mxu0
    %v792 = vadd.f32 0.0, %v791
    %v793 = vpop.f32.mrb[0].mxu0
    %v794 = vadd.f32 0.0, %v793
    %795 = vdwg.mxu0
    %v796 = vadd.f32 %v189, %v792
    %v797 = vadd.f32 %v191, %v794
    %v798 = vxor.u32 %v796, 2147483648
    %v799 = vmul.f32 %v798, 1.442695
    %v800 = vpow.pop %v799
    %v801 = vadd.f32 %v800, 1.0
    %v802 = vrcp.pop %v801
    %v803 = vmul.f32 1.0, %v802
    %v804 = vtanh.pop %v797
    %v805 = vxor.u32 %v797, 2147483648
    %v806 = vmul.f32 %v805, 1.442695
    %v807 = vpow.pop %v806
    %v808 = vadd.f32 %v807, 1.0
    %v809 = vrcp.pop %v808
    %v810 = vmul.f32 1.0, %v809
    %v811 = vmul.f32 %v803, %v717
    %v812 = vmul.f32 %v803, %v804
    %814 = vrot.lane.b32.xlu0 %v812, 64
    %v815 = vpop.permute.xlu0 %814
    %v817 = vadd.f32 %v811, %v815
    %v818 = vtanh.pop %v817
    %v819 = vmul.f32 %v810, %v818
    %821 = vrot.lane.b32.xlu0 %v819, 64
    %v822 = vpop.permute.xlu0 %821
    %v823 = vsel %vm221, %v822, 0
    %825 = vmatprep.subr.mxu0 %v206
    %826 = vmatpush1.msra.mxu0 %v205
    %827 = vmatprep.subr.mxu0 %v208
    %828 = vmatpush1.msra.mxu0 %v207
    %829 = vmatprep.subr.mxu0 %v210
    %830 = vmatpush1.msra.mxu0 %v209
    %831 = vmatprep.subr.mxu0 %v212
    %832 = vmatpush1.msra.mxu0 %v211
    %833 = vmatprep.subr.mxu0 %v214
    %834 = vmatpush1.msra.mxu0 %v213
    %835 = vmatprep.subr.mxu0 %v216
    %836 = vmatpush1.msra.mxu0 %v215
    %837 = vmatprep.subr.mxu0 %v218
    %838 = vmatpush1.msra.mxu0 %v217
    %839 = vmatprep.subr.mxu0 %v220
    %840 = vmatpush1.msra.mxu0 %v219
    %841 = vmatprep.subr.mxu0 0.0
    %842 = vmatpush1.msra.mxu0 0.0
    %843 = vmatprep.subr.mxu0 0.0
    %844 = vmatpush1.msra.mxu0 0.0
    %845 = vmatprep.subr.mxu0 0.0
    %846 = vmatpush1.msra.mxu0 0.0
    %847 = vmatprep.subr.mxu0 0.0
    %848 = vmatpush1.msra.mxu0 0.0
    %849 = vmatprep.subr.mxu0 0.0
    %850 = vmatpush1.msra.mxu0 0.0
    %851 = vmatprep.subr.mxu0 0.0
    %852 = vmatpush1.msra.mxu0 0.0
    %853 = vmatprep.subr.mxu0 0.0
    %854 = vmatpush1.msra.mxu0 0.0
    %855 = vmatprep.subr.mxu0 0.0
    %856 = vmatpush1.msra.mxu0 0.0
    %857 = vmatprep.subr.mxu0 0.0
    %858 = vmatpush1.msra.mxu0 0.0
    %859 = vmatprep.subr.mxu0 0.0
    %860 = vmatpush1.msra.mxu0 0.0
    %861 = vmatprep.subr.mxu0 0.0
    %862 = vmatpush1.msra.mxu0 0.0
    %863 = vmatprep.subr.mxu0 0.0
    %864 = vmatpush1.msra.mxu0 0.0
    %865 = vmatprep.subr.mxu0 0.0
    %866 = vmatpush1.msra.mxu0 0.0
    %867 = vmatprep.subr.mxu0 0.0
    %868 = vmatpush1.msra.mxu0 0.0
    %869 = vmatprep.subr.mxu0 0.0
    %870 = vmatpush1.msra.mxu0 0.0
    %871 = vmatprep.subr.mxu0 0.0
    %872 = vmatpush1.msra.mxu0 0.0
    %873 = vmatprep.subr.mxu0 0.0
    %874 = vmatpush1.msra.mxu0 0.0
    %875 = vmatprep.subr.mxu0 0.0
    %876 = vmatpush1.msra.mxu0 0.0
    %877 = vmatprep.subr.mxu0 0.0
    %878 = vmatpush1.msra.mxu0 0.0
    %879 = vmatprep.subr.mxu0 0.0
    %880 = vmatpush1.msra.mxu0 0.0
    %881 = vmatprep.subr.mxu0 0.0
    %882 = vmatpush1.msra.mxu0 0.0
    %883 = vmatprep.subr.mxu0 0.0
    %884 = vmatpush1.msra.mxu0 0.0
    %885 = vmatprep.subr.mxu0 0.0
    %886 = vmatpush1.msra.mxu0 0.0
    %887 = vmatprep.subr.mxu0 0.0
    %888 = vmatpush1.msra.mxu0 0.0
    %889 = vmatprep.mubr.f32.mxu0 0.0
    %890 = vmatmul.mubr.f32.gmra.mrb[0].mxu0 %v823
    %v891 = vpop.f32.mrb[0].mxu0
    %v892 = vadd.f32 0.0, %v891
    %v893 = vpop.f32.mrb[0].mxu0
    %v894 = vadd.f32 0.0, %v893
    %895 = vdwg.mxu0
    %v896 = vadd.f32 %v195, %v892
    %v897 = vadd.f32 %v197, %v894
    %v898 = vxor.u32 %v896, 2147483648
    %v899 = vmul.f32 %v898, 1.442695
    %v900 = vpow.pop %v899
    %v901 = vadd.f32 %v900, 1.0
    %v902 = vrcp.pop %v901
    %v903 = vmul.f32 1.0, %v902
    %v904 = vtanh.pop %v897
    %v905 = vxor.u32 %v897, 2147483648
    %v906 = vmul.f32 %v905, 1.442695
    %v907 = vpow.pop %v906
    %v908 = vadd.f32 %v907, 1.0
    %v909 = vrcp.pop %v908
    %v910 = vmul.f32 1.0, %v909
    %v911 = vmul.f32 %v903, %v817
    %v912 = vmul.f32 %v903, %v904
    %914 = vrot.lane.b32.xlu0 %v912, 64
    %v915 = vpop.permute.xlu0 %914
    %v917 = vadd.f32 %v911, %v915
    %v918 = vtanh.pop %v917
    %v919 = vmul.f32 %v910, %v918
    %921 = vrot.lane.b32.xlu0 %v919, 64
    %v922 = vpop.permute.xlu0 %921
    %v923 = vsel %vm221, %v922, 0
    %925 = vmatprep.subr.mxu0 %v206
    %926 = vmatpush1.msra.mxu0 %v205
    %927 = vmatprep.subr.mxu0 %v208
    %928 = vmatpush1.msra.mxu0 %v207
    %929 = vmatprep.subr.mxu0 %v210
    %930 = vmatpush1.msra.mxu0 %v209
    %931 = vmatprep.subr.mxu0 %v212
    %932 = vmatpush1.msra.mxu0 %v211
    %933 = vmatprep.subr.mxu0 %v214
    %934 = vmatpush1.msra.mxu0 %v213
    %935 = vmatprep.subr.mxu0 %v216
    %936 = vmatpush1.msra.mxu0 %v215
    %937 = vmatprep.subr.mxu0 %v218
    %938 = vmatpush1.msra.mxu0 %v217
    %939 = vmatprep.subr.mxu0 %v220
    %940 = vmatpush1.msra.mxu0 %v219
    %941 = vmatprep.subr.mxu0 0.0
    %942 = vmatpush1.msra.mxu0 0.0
    %943 = vmatprep.subr.mxu0 0.0
    %944 = vmatpush1.msra.mxu0 0.0
    %945 = vmatprep.subr.mxu0 0.0
    %946 = vmatpush1.msra.mxu0 0.0
    %947 = vmatprep.subr.mxu0 0.0
    %948 = vmatpush1.msra.mxu0 0.0
    %949 = vmatprep.subr.mxu0 0.0
    %950 = vmatpush1.msra.mxu0 0.0
    %951 = vmatprep.subr.mxu0 0.0
    %952 = vmatpush1.msra.mxu0 0.0
    %953 = vmatprep.subr.mxu0 0.0
    %954 = vmatpush1.msra.mxu0 0.0
    %955 = vmatprep.subr.mxu0 0.0
    %956 = vmatpush1.msra.mxu0 0.0
    %957 = vmatprep.subr.mxu0 0.0
    %958 = vmatpush1.msra.mxu0 0.0
    %959 = vmatprep.subr.mxu0 0.0
    %960 = vmatpush1.msra.mxu0 0.0
    %961 = vmatprep.subr.mxu0 0.0
    %962 = vmatpush1.msra.mxu0 0.0
    %963 = vmatprep.subr.mxu0 0.0
    %964 = vmatpush1.msra.mxu0 0.0
    %965 = vmatprep.subr.mxu0 0.0
    %966 = vmatpush1.msra.mxu0 0.0
    %967 = vmatprep.subr.mxu0 0.0
    %968 = vmatpush1.msra.mxu0 0.0
    %969 = vmatprep.subr.mxu0 0.0
    %970 = vmatpush1.msra.mxu0 0.0
    %971 = vmatprep.subr.mxu0 0.0
    %972 = vmatpush1.msra.mxu0 0.0
    %973 = vmatprep.subr.mxu0 0.0
    %974 = vmatpush1.msra.mxu0 0.0
    %975 = vmatprep.subr.mxu0 0.0
    %976 = vmatpush1.msra.mxu0 0.0
    %977 = vmatprep.subr.mxu0 0.0
    %978 = vmatpush1.msra.mxu0 0.0
    %979 = vmatprep.subr.mxu0 0.0
    %980 = vmatpush1.msra.mxu0 0.0
    %981 = vmatprep.subr.mxu0 0.0
    %982 = vmatpush1.msra.mxu0 0.0
    %983 = vmatprep.subr.mxu0 0.0
    %984 = vmatpush1.msra.mxu0 0.0
    %985 = vmatprep.subr.mxu0 0.0
    %986 = vmatpush1.msra.mxu0 0.0
    %987 = vmatprep.subr.mxu0 0.0
    %988 = vmatpush1.msra.mxu0 0.0
    %989 = vmatprep.mubr.f32.mxu0 0.0
    %990 = vmatmul.mubr.f32.gmra.mrb[0].mxu0 %v923
    %v991 = vpop.f32.mrb[0].mxu0
    %v992 = vadd.f32 0.0, %v991
    %v993 = vpop.f32.mrb[0].mxu0
    %v994 = vadd.f32 0.0, %v993
    %995 = vdwg.mxu0
    %v996 = vadd.f32 %v201, %v992
    %v997 = vadd.f32 %v203, %v994
    %v998 = vxor.u32 %v996, 2147483648
    %v999 = vmul.f32 %v998, 1.442695
    %v1000 = vpow.pop %v999
    %v1001 = vadd.f32 %v1000, 1.0
    %v1002 = vrcp.pop %v1001
    %v1003 = vmul.f32 1.0, %v1002
    %v1004 = vtanh.pop %v997
    %v1005 = vxor.u32 %v997, 2147483648
    %v1006 = vmul.f32 %v1005, 1.442695
    %v1007 = vpow.pop %v1006
    %v1008 = vadd.f32 %v1007, 1.0
    %v1009 = vrcp.pop %v1008
    %v1010 = vmul.f32 1.0, %v1009
    %v1011 = vmul.f32 %v1003, %v917
    %v1012 = vmul.f32 %v1003, %v1004
    %1014 = vrot.lane.b32.xlu0 %v1012, 64
    %v1015 = vpop.permute.xlu0 %1014
    %v1017 = vadd.f32 %v1011, %v1015
    %v1018 = vtanh.pop %v1017
    %v1019 = vmul.f32 %v1010, %v1018
    %1021 = vrot.lane.b32.xlu0 %v1019, 64
    %v1022 = vpop.permute.xlu0 %1021
    %1024 = vst.msk [vmem:[#allocation5] sm:$0xff] %vm221, %v1022
    // Predicated region
    $region22: #{tpu_custom_call.1} parent=1 // pred_check
      _
    $region23: #{tpu_custom_call.1} parent=1 // pred_check_branch
      %1026 = sbr.rel (0) target = $region25
    $region24: #{tpu_custom_call.1} parent=1 // pred_region
      %s1028 = ssub.s32 128, 128
      %1029 = vsyncadd [#allocation4], %s1028
      %s1031 = sshll.u32 [#allocation5], 4
      %s1032 = int_to_ptr.vmem [resolvable:$true] %s1031
      %1034 = dma.vmem_to_hbm [thread:$0]  %s1032, 128, %s4, [#allocation4]
    $region25: #{tpu_custom_call.1} parent=1 // pred_fallthru
      _
    // Predicated region
    $region26: #{tpu_custom_call.1} parent=1 // pred_check
      _
    $region27: #{tpu_custom_call.1} parent=1 // pred_check_branch
      %1036 = sbr.rel (0) target = $region29
    $region28: #{tpu_custom_call.1} parent=1 // pred_region
      %1037 = dma.done [#allocation4], 128
    $region29: #{tpu_custom_call.1} parent=1 // pred_fallthru
      _
    %1038 = vsyncpa [#allocation3], 1
    %1039 = vsyncpa [#allocation4], 1

</llo_original>
